<compile_context>
chip_gen: v7x
topology: tpu7x:2x2x1
jax: 0.10.0
libtpu: 0.0.40
codegen_flags: <defaults>
</compile_context>

<pallas_src>
import jax
import jax.numpy as jnp
import numpy as np
from jax.experimental import pallas as pl
from jax.experimental.pallas import tpu as pltpu

D_MODEL = 64
D_FF = 128
LANES = 128          # lane-dense padded width of the output tile / folded wout
EPS = 1e-5
SCALE = 1.0 / np.sqrt(float(D_MODEL))

# ---- packed-slab layout ------------------------------------------------------------
# wemb : (input_dim, 256) = [ we | we@wq1*SCALE | we@wk1 | we@(wv1@wo1) ]
# wmb  : (80, 256)
#   rows 0:64   = [ w1 (0:128) | wout_folded_pad (128:256) ]
#   rows 64:80  = bias rows (each zero-padded to 256 lanes):
ROW_BHQKV = 64   # [ be | (be@wq1+bq1)*SCALE | be@wk1+bk1 | be@wv1@wo1 + bv1@wo1 + bo1 ]
ROW_CA = 65      # folded cross-attention constant: bv2@wo2 + bo2
ROW_LN1W, ROW_LN1B = 66, 67
ROW_LN2W, ROW_LN2B = 68, 69
ROW_B1 = 70
ROW_B2 = 71
ROW_BOUT = 72    # ln3b@wout + bout, zero-padded to 128 lanes
N_BIAS_ROWS = 16
WMB_ROWS = D_MODEL + N_BIAS_ROWS   # 80
# w2   : (128, 64)  feed-forward second projection (unchanged)


def _normalize(x):
    # one-pass stats (sum / sum-of-squares) + rsqrt; variance clamped to >= 0 so a
    # slightly-negative E[x^2]-E[x]^2 can never reach rsqrt as a NaN.
    inv_d = 1.0 / x.shape[-1]
    s1 = jnp.sum(x, axis=-1, keepdims=True)
    s2 = jnp.sum(x * x, axis=-1, keepdims=True)
    mu = s1 * inv_d
    var = jnp.maximum(s2 * inv_d - mu * mu, 0.0)
    return (x - mu) * jax.lax.rsqrt(var + EPS)


def _layernorm(x, w, b):
    return _normalize(x) * w + b


# ------------------------------ Pallas kernel ---------------------------------------
def decoder_kernel(x_ref, wemb_ref, wmb_ref, w2_ref, out_ref):
    f32 = jnp.float32

    def brow(r, n):           # static single-row view of the bias block
        return wmb_ref[r:r + 1, 0:n]

    # fused embedding + (pre-scaled Q | K | V·Wo1) projection: one MXU pass
    hqkv = (jnp.dot(x_ref[...], wemb_ref[...], preferred_element_type=f32)
            + brow(ROW_BHQKV, 4 * D_MODEL))                                  # (S, 256)
    h = hqkv[:, 0:D_MODEL]
    q = hqkv[:, D_MODEL:2 * D_MODEL]          # already scaled by 1/sqrt(d)
    k = hqkv[:, 2 * D_MODEL:3 * D_MODEL]
    v = hqkv[:, 3 * D_MODEL:4 * D_MODEL]      # already projected through wo1 (+bo1)

    # --- single-head self-attention ---
    s = jax.lax.dot_general(q, k, (((1,), (1,)), ((), ())),
                            preferred_element_type=f32)                      # (S, S)
    s = s - jnp.max(s, axis=-1, keepdims=True)
    p = jnp.exp(s)
    p = p * pl.reciprocal(jnp.sum(p, axis=-1, keepdims=True), approx=True)
    sa = jnp.dot(p, v, preferred_element_type=f32)                           # (S, 64)

    h = _layernorm(h + sa, brow(ROW_LN1W, D_MODEL), brow(ROW_LN1B, D_MODEL))

    # --- cross-attention on all-zero memory == constant row (folded at pack time) ---
    h = _layernorm(h + brow(ROW_CA, D_MODEL),
                   brow(ROW_LN2W, D_MODEL), brow(ROW_LN2B, D_MODEL))

    # --- feed-forward ---
    ff = jnp.maximum(
        jnp.dot(h, wmb_ref[0:D_MODEL, 0:D_FF], preferred_element_type=f32)
        + brow(ROW_B1, D_FF), 0.0)
    ff = jnp.dot(ff, w2_ref[...], preferred_element_type=f32) + brow(ROW_B2, D_MODEL)

    # --- LN3 (normalization only; affine folded into wout) + output projection ---
    xhat = _normalize(h + ff)
    out = (jnp.dot(xhat, wmb_ref[0:D_MODEL, D_FF:D_FF + LANES],
                   preferred_element_type=f32)
           + brow(ROW_BOUT, LANES))
    out_ref[...] = out.astype(out_ref.dtype)                                 # (S, 128)


# ------------------------------ parameter packing (runs ONCE) -----------------------
def pack_params(p, output_dim):
    f32 = jnp.float32
    dot = lambda a, b: jnp.dot(a, b, preferred_element_type=f32)

    # wo1/bo1 folded into the V projection; SCALE folded into Q; embedding folded in.
    wvo = dot(p["wv1"], p["wo1"])                                            # (64, 64)
    wemb = jnp.concatenate(
        [p["we"],
         dot(p["we"], p["wq1"]) * SCALE,
         dot(p["we"], p["wk1"]),
         dot(p["we"], wvo)], axis=1)                                         # (in, 256)

    bhqkv = jnp.concatenate(
        [p["be"],
         (dot(p["be"], p["wq1"]) + p["bq1"]) * SCALE,
         dot(p["be"], p["wk1"]) + p["bk1"],
         dot(p["be"], wvo) + dot(p["bv1"], p["wo1"]) + p["bo1"]], axis=1)    # (1, 256)

    # cross-attention with zero memory folds to this constant row
    ca = dot(p["bv2"], p["wo2"]) + p["bo2"]                                  # (1, 64)

    # LN3 affine folded into the output projection
    wout_f = p["ln3w"].reshape(-1, 1) * p["wout"]                            # (64, out)
    bout_f = dot(p["ln3b"], p["wout"]) + p["bout"]                           # (1, out)
    wout_pad = jnp.zeros((D_MODEL, LANES), f32).at[:, :output_dim].set(wout_f)

    wmid = jnp.concatenate([p["w1"], wout_pad], axis=1)                      # (64, 256)

    def row(r):
        return jnp.zeros((1, 2 * LANES), f32).at[:, : r.shape[1]].set(r)

    rows = [bhqkv, ca, p["ln1w"], p["ln1b"], p["ln2w"], p["ln2b"],
            p["b1"], p["b2"], bout_f]
    bias = jnp.concatenate(
        [row(r) for r in rows]
        + [jnp.zeros((N_BIAS_ROWS - len(rows), 2 * LANES), f32)], axis=0)    # (16, 256)

    wmb = jnp.concatenate([wmid, bias], axis=0)                              # (80, 256)
    return wemb, wmb, p["w2"].astype(f32)


# ------------------------------ wrapper ---------------------------------------------
def make_decoder_forward(params, input_dim, output_dim):
    """Packs parameter slabs once; returns a jitted forward that only runs the kernel."""
    wemb, wmb, w2 = pack_params(params, output_dim)

    vmem = pl.BlockSpec(memory_space=pltpu.MemorySpace.VMEM)

    @jax.jit
    def fwd(x):
        out = pl.pallas_call(
            decoder_kernel,
            out_shape=jax.ShapeDtypeStruct((x.shape[0], LANES), jnp.float32),
            in_specs=[vmem, vmem, vmem, vmem],
            out_specs=vmem,
        )(x, wemb, wmb, w2)
        return out[:, :output_dim]

    return fwd


# ------------------------------ parameter init --------------------------------------
def init_params(key, input_dim, output_dim):
    ks = iter(jax.random.split(key, 40))

    def rnd(shape, scale=0.05):
        return (scale * jax.random.normal(next(ks), shape)).astype(jnp.float32)

    # LN params perturbed around the PyTorch defaults so the LN3->wout fold is exercised
    lnw = lambda: (1.0 + rnd((1, D_MODEL))).astype(jnp.float32)
    lnb = lambda: rnd((1, D_MODEL))
    return dict(
        we=rnd((input_dim, D_MODEL)), be=rnd((1, D_MODEL)),
        # self-attention
        wq1=rnd((D_MODEL, D_MODEL)), wk1=rnd((D_MODEL, D_MODEL)), wv1=rnd((D_MODEL, D_MODEL)),
        bq1=rnd((1, D_MODEL)), bk1=rnd((1, D_MODEL)), bv1=rnd((1, D_MODEL)),
        wo1=rnd((D_MODEL, D_MODEL)), bo1=rnd((1, D_MODEL)),
        # cross-attention (only bv2/wo2/bo2 survive the zero-memory fold)
        wq2=rnd((D_MODEL, D_MODEL)), wk2=rnd((D_MODEL, D_MODEL)), wv2=rnd((D_MODEL, D_MODEL)),
        bq2=rnd((1, D_MODEL)), bk2=rnd((1, D_MODEL)), bv2=rnd((1, D_MODEL)),
        wo2=rnd((D_MODEL, D_MODEL)), bo2=rnd((1, D_MODEL)),
        # layer norms
        ln1w=lnw(), ln1b=lnb(), ln2w=lnw(), ln2b=lnb(), ln3w=lnw(), ln3b=lnb(),
        # feed-forward
        w1=rnd((D_MODEL, D_FF)), b1=rnd((1, D_FF)),
        w2=rnd((D_FF, D_MODEL)), b2=rnd((1, D_MODEL)),
        # output projection
        wout=rnd((D_MODEL, output_dim)), bout=rnd((1, output_dim)),
    )


# ------------------------------ pure-JAX reference -----------------------------------
def _reference_forward(x, p):
    hp = jax.lax.Precision.HIGHEST

    def mm(a, b):
        return jnp.dot(a, b, precision=hp)

    def attn(q_in, kv_in, wq, bq, wk, bk, wv, bv, wo, bo):
        q = mm(q_in, wq) + bq
        k = mm(kv_in, wk) + bk
        v = mm(kv_in, wv) + bv
        s = mm(q, k.T) * SCALE
        a = jax.nn.softmax(s, axis=-1)
        return mm(mm(a, v), wo) + bo

    def ln(y, w, b):
        mu = jnp.mean(y, axis=-1, keepdims=True)
        var = jnp.mean((y - mu) ** 2, axis=-1, keepdims=True)
        return (y - mu) / jnp.sqrt(var + EPS) * w + b

    h = mm(x, p["we"]) + p["be"]
    sa = attn(h, h, p["wq1"], p["bq1"], p["wk1"], p["bk1"],
              p["wv1"], p["bv1"], p["wo1"], p["bo1"])
    h = ln(h + sa, p["ln1w"], p["ln1b"])
    mem = jnp.zeros((x.shape[0], D_MODEL), jnp.float32)   # as in the PyTorch module
    ca = attn(h, mem, p["wq2"], p["bq2"], p["wk2"], p["bk2"],
              p["wv2"], p["bv2"], p["wo2"], p["bo2"])
    h = ln(h + ca, p["ln2w"], p["ln2b"])
    ff = mm(jnp.maximum(mm(h, p["w1"]) + p["b1"], 0.0), p["w2"]) + p["b2"]
    h = ln(h + ff, p["ln3w"], p["ln3b"])
    return mm(h, p["wout"]) + p["bout"]


# ------------------------------------ main -------------------------------------------
if __name__ == "__main__":
    batch, input_dim, output_dim = 8, 32, 16
    key = jax.random.PRNGKey(0)
    kx, kp = jax.random.split(key)
    x = jax.random.normal(kx, (batch, input_dim), jnp.float32)
    params = init_params(kp, input_dim, output_dim)

    fwd = make_decoder_forward(params, input_dim, output_dim)   # packs slabs once
    out = jax.block_until_ready(fwd(x))

    ref = _reference_forward(x, params)
    assert out.shape == (batch, output_dim)
    assert np.allclose(np.asarray(out), np.asarray(ref), atol=1e-3, rtol=1e-3), (
        float(np.max(np.abs(np.asarray(out) - np.asarray(ref)))))
    print("KERNEL_OK")
</pallas_src>

<mosaic_0001>
module attributes {stable_mosaic.version = 11 : i64} {
  func.func @decoder_kernel(%arg0: memref<8x32xf32, #tpu.memory_space<vmem>>, %arg1: memref<32x256xf32, #tpu.memory_space<vmem>>, %arg2: memref<80x256xf32, #tpu.memory_space<vmem>>, %arg3: memref<128x64xf32, #tpu.memory_space<vmem>>, %arg4: memref<8x128xf32, #tpu.memory_space<vmem>>) attributes {dimension_semantics = [], scalar_prefetch = 0 : i64, scratch_operands = 0 : i64, tpu.core_type = #tpu.core_type<tc>} {
    %c0 = arith.constant 0 : index
    %c0_0 = arith.constant 0 : index
    %0 = vector.load %arg0[%c0, %c0_0] : memref<8x32xf32, #tpu.memory_space<vmem>>, vector<8x32xf32>
    %c0_1 = arith.constant 0 : index
    %c0_2 = arith.constant 0 : index
    %1 = vector.load %arg1[%c0_1, %c0_2] : memref<32x256xf32, #tpu.memory_space<vmem>>, vector<32x256xf32>
    %cst = arith.constant dense<0.000000e+00> : vector<8x256xf32>
    %2 = tpu.matmul %0, %1, %cst {dimension_numbers = #tpu.dot_dimension_numbers<[1], [0], [0], [1], [0, 0, 1, 1], [], []>} : vector<8x32xf32>, vector<32x256xf32>, vector<8x256xf32> -> vector<8x256xf32>
    %c64 = arith.constant 64 : index
    %c0_3 = arith.constant 0 : index
    %3 = vector.load %arg2[%c64, %c0_3] : memref<80x256xf32, #tpu.memory_space<vmem>>, vector<1x256xf32>
    %4 = vector.broadcast %3 : vector<1x256xf32> to vector<8x256xf32>
    %5 = arith.addf %2, %4 : vector<8x256xf32>
    %6 = vector.extract_strided_slice %5 {offsets = [0, 0], sizes = [8, 64], strides = [1, 1]} : vector<8x256xf32> to vector<8x64xf32>
    %7 = vector.extract_strided_slice %5 {offsets = [0, 64], sizes = [8, 64], strides = [1, 1]} : vector<8x256xf32> to vector<8x64xf32>
    %8 = vector.extract_strided_slice %5 {offsets = [0, 128], sizes = [8, 64], strides = [1, 1]} : vector<8x256xf32> to vector<8x64xf32>
    %9 = vector.extract_strided_slice %5 {offsets = [0, 192], sizes = [8, 64], strides = [1, 1]} : vector<8x256xf32> to vector<8x64xf32>
    %cst_4 = arith.constant dense<0.000000e+00> : vector<8x8xf32>
    %10 = tpu.matmul %7, %8, %cst_4 {dimension_numbers = #tpu.dot_dimension_numbers<[1], [1], [0], [0], [0, 0, 1, 0], [], []>} : vector<8x64xf32>, vector<8x64xf32>, vector<8x8xf32> -> vector<8x8xf32>
    %cst_5 = arith.constant dense<0xFF800000> : vector<8xf32>
    %11 = vector.multi_reduction <maximumf>, %10, %cst_5 [1] : vector<8x8xf32> to vector<8xf32>
    %12 = vector.shape_cast %11 : vector<8xf32> to vector<8x1xf32>
    %13 = vector.broadcast %12 : vector<8x1xf32> to vector<8x8xf32>
    %14 = arith.subf %10, %13 : vector<8x8xf32>
    %15 = math.exp %14 : vector<8x8xf32>
    %cst_6 = arith.constant dense<0.000000e+00> : vector<8xf32>
    %16 = vector.multi_reduction <add>, %15, %cst_6 [1] : vector<8x8xf32> to vector<8xf32>
    %17 = vector.shape_cast %16 : vector<8xf32> to vector<8x1xf32>
    %18 = tpu.reciprocal %17 {approx = true} : vector<8x1xf32> -> vector<8x1xf32>
    %19 = vector.broadcast %18 : vector<8x1xf32> to vector<8x8xf32>
    %20 = arith.mulf %15, %19 : vector<8x8xf32>
    %cst_7 = arith.constant dense<0.000000e+00> : vector<8x64xf32>
    %21 = tpu.matmul %20, %9, %cst_7 {dimension_numbers = #tpu.dot_dimension_numbers<[1], [0], [0], [1], [0, 0, 1, 1], [], []>} : vector<8x8xf32>, vector<8x64xf32>, vector<8x64xf32> -> vector<8x64xf32>
    %22 = arith.addf %6, %21 : vector<8x64xf32>
    %c66 = arith.constant 66 : index
    %c0_8 = arith.constant 0 : index
    %23 = vector.load %arg2[%c66, %c0_8] : memref<80x256xf32, #tpu.memory_space<vmem>>, vector<1x64xf32>
    %c67 = arith.constant 67 : index
    %c0_9 = arith.constant 0 : index
    %24 = vector.load %arg2[%c67, %c0_9] : memref<80x256xf32, #tpu.memory_space<vmem>>, vector<1x64xf32>
    %cst_10 = arith.constant dense<0.000000e+00> : vector<8xf32>
    %25 = vector.multi_reduction <add>, %22, %cst_10 [1] : vector<8x64xf32> to vector<8xf32>
    %26 = vector.shape_cast %25 : vector<8xf32> to vector<8x1xf32>
    %27 = arith.mulf %22, %22 : vector<8x64xf32>
    %cst_11 = arith.constant dense<0.000000e+00> : vector<8xf32>
    %28 = vector.multi_reduction <add>, %27, %cst_11 [1] : vector<8x64xf32> to vector<8xf32>
    %29 = vector.shape_cast %28 : vector<8xf32> to vector<8x1xf32>
    %cst_12 = arith.constant 1.562500e-02 : f32
    %30 = vector.broadcast %cst_12 : f32 to vector<8x1xf32>
    %31 = arith.mulf %26, %30 : vector<8x1xf32>
    %cst_13 = arith.constant 1.562500e-02 : f32
    %32 = vector.broadcast %cst_13 : f32 to vector<8x1xf32>
    %33 = arith.mulf %29, %32 : vector<8x1xf32>
    %34 = arith.mulf %31, %31 : vector<8x1xf32>
    %35 = arith.subf %33, %34 : vector<8x1xf32>
    %cst_14 = arith.constant 0.000000e+00 : f32
    %36 = vector.broadcast %cst_14 : f32 to vector<8x1xf32>
    %37 = arith.maximumf %35, %36 : vector<8x1xf32>
    %38 = vector.broadcast %31 : vector<8x1xf32> to vector<8x64xf32>
    %39 = arith.subf %22, %38 : vector<8x64xf32>
    %cst_15 = arith.constant 9.99999974E-6 : f32
    %40 = vector.broadcast %cst_15 : f32 to vector<8x1xf32>
    %41 = arith.addf %37, %40 : vector<8x1xf32>
    %42 = math.rsqrt %41 : vector<8x1xf32>
    %43 = vector.broadcast %42 : vector<8x1xf32> to vector<8x64xf32>
    %44 = arith.mulf %39, %43 : vector<8x64xf32>
    %45 = vector.broadcast %23 : vector<1x64xf32> to vector<8x64xf32>
    %46 = arith.mulf %44, %45 : vector<8x64xf32>
    %47 = vector.broadcast %24 : vector<1x64xf32> to vector<8x64xf32>
    %48 = arith.addf %46, %47 : vector<8x64xf32>
    %c65 = arith.constant 65 : index
    %c0_16 = arith.constant 0 : index
    %49 = vector.load %arg2[%c65, %c0_16] : memref<80x256xf32, #tpu.memory_space<vmem>>, vector<1x64xf32>
    %50 = vector.broadcast %49 : vector<1x64xf32> to vector<8x64xf32>
    %51 = arith.addf %48, %50 : vector<8x64xf32>
    %c68 = arith.constant 68 : index
    %c0_17 = arith.constant 0 : index
    %52 = vector.load %arg2[%c68, %c0_17] : memref<80x256xf32, #tpu.memory_space<vmem>>, vector<1x64xf32>
    %c69 = arith.constant 69 : index
    %c0_18 = arith.constant 0 : index
    %53 = vector.load %arg2[%c69, %c0_18] : memref<80x256xf32, #tpu.memory_space<vmem>>, vector<1x64xf32>
    %cst_19 = arith.constant dense<0.000000e+00> : vector<8xf32>
    %54 = vector.multi_reduction <add>, %51, %cst_19 [1] : vector<8x64xf32> to vector<8xf32>
    %55 = vector.shape_cast %54 : vector<8xf32> to vector<8x1xf32>
    %56 = arith.mulf %51, %51 : vector<8x64xf32>
    %cst_20 = arith.constant dense<0.000000e+00> : vector<8xf32>
    %57 = vector.multi_reduction <add>, %56, %cst_20 [1] : vector<8x64xf32> to vector<8xf32>
    %58 = vector.shape_cast %57 : vector<8xf32> to vector<8x1xf32>
    %cst_21 = arith.constant 1.562500e-02 : f32
    %59 = vector.broadcast %cst_21 : f32 to vector<8x1xf32>
    %60 = arith.mulf %55, %59 : vector<8x1xf32>
    %cst_22 = arith.constant 1.562500e-02 : f32
    %61 = vector.broadcast %cst_22 : f32 to vector<8x1xf32>
    %62 = arith.mulf %58, %61 : vector<8x1xf32>
    %63 = arith.mulf %60, %60 : vector<8x1xf32>
    %64 = arith.subf %62, %63 : vector<8x1xf32>
    %cst_23 = arith.constant 0.000000e+00 : f32
    %65 = vector.broadcast %cst_23 : f32 to vector<8x1xf32>
    %66 = arith.maximumf %64, %65 : vector<8x1xf32>
    %67 = vector.broadcast %60 : vector<8x1xf32> to vector<8x64xf32>
    %68 = arith.subf %51, %67 : vector<8x64xf32>
    %cst_24 = arith.constant 9.99999974E-6 : f32
    %69 = vector.broadcast %cst_24 : f32 to vector<8x1xf32>
    %70 = arith.addf %66, %69 : vector<8x1xf32>
    %71 = math.rsqrt %70 : vector<8x1xf32>
    %72 = vector.broadcast %71 : vector<8x1xf32> to vector<8x64xf32>
    %73 = arith.mulf %68, %72 : vector<8x64xf32>
    %74 = vector.broadcast %52 : vector<1x64xf32> to vector<8x64xf32>
    %75 = arith.mulf %73, %74 : vector<8x64xf32>
    %76 = vector.broadcast %53 : vector<1x64xf32> to vector<8x64xf32>
    %77 = arith.addf %75, %76 : vector<8x64xf32>
    %c0_25 = arith.constant 0 : index
    %c0_26 = arith.constant 0 : index
    %78 = vector.load %arg2[%c0_25, %c0_26] : memref<80x256xf32, #tpu.memory_space<vmem>>, vector<64x128xf32>
    %cst_27 = arith.constant dense<0.000000e+00> : vector<8x128xf32>
    %79 = tpu.matmul %77, %78, %cst_27 {dimension_numbers = #tpu.dot_dimension_numbers<[1], [0], [0], [1], [0, 0, 1, 1], [], []>} : vector<8x64xf32>, vector<64x128xf32>, vector<8x128xf32> -> vector<8x128xf32>
    %c70 = arith.constant 70 : index
    %c0_28 = arith.constant 0 : index
    %80 = vector.load %arg2[%c70, %c0_28] : memref<80x256xf32, #tpu.memory_space<vmem>>, vector<1x128xf32>
    %81 = vector.broadcast %80 : vector<1x128xf32> to vector<8x128xf32>
    %82 = arith.addf %79, %81 : vector<8x128xf32>
    %cst_29 = arith.constant 0.000000e+00 : f32
    %83 = vector.broadcast %cst_29 : f32 to vector<8x128xf32>
    %84 = arith.maximumf %82, %83 : vector<8x128xf32>
    %c0_30 = arith.constant 0 : index
    %c0_31 = arith.constant 0 : index
    %85 = vector.load %arg3[%c0_30, %c0_31] : memref<128x64xf32, #tpu.memory_space<vmem>>, vector<128x64xf32>
    %cst_32 = arith.constant dense<0.000000e+00> : vector<8x64xf32>
    %86 = tpu.matmul %84, %85, %cst_32 {dimension_numbers = #tpu.dot_dimension_numbers<[1], [0], [0], [1], [0, 0, 1, 1], [], []>} : vector<8x128xf32>, vector<128x64xf32>, vector<8x64xf32> -> vector<8x64xf32>
    %c71 = arith.constant 71 : index
    %c0_33 = arith.constant 0 : index
    %87 = vector.load %arg2[%c71, %c0_33] : memref<80x256xf32, #tpu.memory_space<vmem>>, vector<1x64xf32>
    %88 = vector.broadcast %87 : vector<1x64xf32> to vector<8x64xf32>
    %89 = arith.addf %86, %88 : vector<8x64xf32>
    %90 = arith.addf %77, %89 : vector<8x64xf32>
    %cst_34 = arith.constant dense<0.000000e+00> : vector<8xf32>
    %91 = vector.multi_reduction <add>, %90, %cst_34 [1] : vector<8x64xf32> to vector<8xf32>
    %92 = vector.shape_cast %91 : vector<8xf32> to vector<8x1xf32>
    %93 = arith.mulf %90, %90 : vector<8x64xf32>
    %cst_35 = arith.constant dense<0.000000e+00> : vector<8xf32>
    %94 = vector.multi_reduction <add>, %93, %cst_35 [1] : vector<8x64xf32> to vector<8xf32>
    %95 = vector.shape_cast %94 : vector<8xf32> to vector<8x1xf32>
    %cst_36 = arith.constant 1.562500e-02 : f32
    %96 = vector.broadcast %cst_36 : f32 to vector<8x1xf32>
    %97 = arith.mulf %92, %96 : vector<8x1xf32>
    %cst_37 = arith.constant 1.562500e-02 : f32
    %98 = vector.broadcast %cst_37 : f32 to vector<8x1xf32>
    %99 = arith.mulf %95, %98 : vector<8x1xf32>
    %100 = arith.mulf %97, %97 : vector<8x1xf32>
    %101 = arith.subf %99, %100 : vector<8x1xf32>
    %cst_38 = arith.constant 0.000000e+00 : f32
    %102 = vector.broadcast %cst_38 : f32 to vector<8x1xf32>
    %103 = arith.maximumf %101, %102 : vector<8x1xf32>
    %104 = vector.broadcast %97 : vector<8x1xf32> to vector<8x64xf32>
    %105 = arith.subf %90, %104 : vector<8x64xf32>
    %cst_39 = arith.constant 9.99999974E-6 : f32
    %106 = vector.broadcast %cst_39 : f32 to vector<8x1xf32>
    %107 = arith.addf %103, %106 : vector<8x1xf32>
    %108 = math.rsqrt %107 : vector<8x1xf32>
    %109 = vector.broadcast %108 : vector<8x1xf32> to vector<8x64xf32>
    %110 = arith.mulf %105, %109 : vector<8x64xf32>
    %c0_40 = arith.constant 0 : index
    %c128 = arith.constant 128 : index
    %111 = vector.load %arg2[%c0_40, %c128] : memref<80x256xf32, #tpu.memory_space<vmem>>, vector<64x128xf32>
    %cst_41 = arith.constant dense<0.000000e+00> : vector<8x128xf32>
    %112 = tpu.matmul %110, %111, %cst_41 {dimension_numbers = #tpu.dot_dimension_numbers<[1], [0], [0], [1], [0, 0, 1, 1], [], []>} : vector<8x64xf32>, vector<64x128xf32>, vector<8x128xf32> -> vector<8x128xf32>
    %c72 = arith.constant 72 : index
    %c0_42 = arith.constant 0 : index
    %113 = vector.load %arg2[%c72, %c0_42] : memref<80x256xf32, #tpu.memory_space<vmem>>, vector<1x128xf32>
    %114 = vector.broadcast %113 : vector<1x128xf32> to vector<8x128xf32>
    %115 = arith.addf %112, %114 : vector<8x128xf32>
    %c0_43 = arith.constant 0 : index
    %c0_44 = arith.constant 0 : index
    %116 = vector.load %arg4[%c0_43, %c0_44] : memref<8x128xf32, #tpu.memory_space<vmem>>, vector<8x128xf32>
    tpu.vector_store %arg4[%c0_43, %c0_44], %115 {strides = array<i32>} : memref<8x128xf32, #tpu.memory_space<vmem>>, vector<8x128xf32>,
    return
  }
}

</mosaic_0001>

<llo_original>
// kernel: fwd.1
$region0: #{fwd.1}
  #allocation0 [shape = 'u32[]', space=smem, size = 0x4, offset = 0x4, fixed_abs, tag = 'smem constant byte address 0x4 - core index']
  #allocation1 [shape = 'u32[144,128]{1,0:T(1,128)}', space=vmem, size = 0x12000, scoped, tag = 'internal scratch']
  %s0 = inlined_call_operand.hbm [shape: f32[8,32], index: 0, kind: input, shape index: {}]
  %s1 = inlined_call_operand.hbm [shape: f32[32,256], index: 1, kind: input, shape index: {}]
  %s2 = inlined_call_operand.hbm [shape: f32[80,256], index: 2, kind: input, shape index: {}]
  %s3 = inlined_call_operand.hbm [shape: f32[128,64], index: 3, kind: input, shape index: {}]
  %s4 = inlined_call_operand.hbm [shape: f32[8,128], index: 4, kind: output, shape index: {}]
  %s5 = sld [smem:[#allocation0]]
  $region42: #{fwd.1} parent=0
    _
  %s7 = ssub.s32 1, %s5
  %s8 = scalar_select 0, %s7, %s5
  $region1: #{fwd.1} parent=0
    #allocation2 [shape = 'u8[4096]{0}', space=vmem, size = 0x1000, scoped, tag = 'input window, operand 0, single buffered']
    #allocation3 [shape = 's32[1]{0}', space=sflag, size = 0x4, scoped, tag = 'scoped memory for fwd.1']
    #allocation4 [shape = 's32[1]{0}', space=sflag, size = 0x4, scoped, tag = 'scoped memory for fwd.1']
    #allocation5 [shape = 'u8[32768]{0}', space=vmem, size = 0x8000, scoped, tag = 'input window, operand 1, single buffered']
    #allocation6 [shape = 's32[1]{0}', space=sflag, size = 0x4, scoped, tag = 'scoped memory for fwd.1']
    #allocation7 [shape = 'u8[81920]{0}', space=vmem, size = 0x14000, scoped, tag = 'input window, operand 2, single buffered']
    #allocation8 [shape = 'u8[65536]{0}', space=vmem, size = 0x10000, scoped, tag = 'input window, operand 3, single buffered']
    #allocation9 [shape = 's32[1]{0}', space=sflag, size = 0x4, scoped, tag = 'scoped memory for fwd.1']
    #allocation10 [shape = 'u8[4096]{0}', space=vmem, size = 0x1000, scoped, tag = 'output window, operand 0, single buffered']
    %9 = vsyncpa [#allocation3], 0
    %10 = vsyncpa [#allocation6], 0
    %11 = vsyncpa [#allocation9], 0
    %12 = vsyncpa [#allocation4], 0
    // Predicated region
    $region2: #{fwd.1} parent=1 // pred_check
      _
    $region3: #{fwd.1} parent=1 // pred_check_branch
      %14 = sbr.rel (0) target = $region5
    $region4: #{fwd.1} parent=1 // pred_region
      %s16 = ssub.s32 128, 128
      %17 = vsyncadd [#allocation3], %s16
      %s19 = sshll.u32 [#allocation2], 4
      %s20 = int_to_ptr.vmem [resolvable:$true] %s19
      %22 = dma.hbm_to_vmem [thread:$0]  %s0, 128, %s20, [#allocation3]
    $region5: #{fwd.1} parent=1 // pred_fallthru
      _
    // Predicated region
    $region6: #{fwd.1} parent=1 // pred_check
      _
    $region7: #{fwd.1} parent=1 // pred_check_branch
      %24 = sbr.rel (0) target = $region9
    $region8: #{fwd.1} parent=1 // pred_region
      %s26 = ssub.s32 1024, 1024
      %27 = vsyncadd [#allocation6], %s26
      %s28 = sshll.u32 [#allocation5], 4
      %s29 = int_to_ptr.vmem [resolvable:$true] %s28
      %34 = dma.hbm_to_vmem [thread:$0]  %s1, 1024, %s29, [#allocation6], 256, 256, 16
    $region9: #{fwd.1} parent=1 // pred_fallthru
      _
    // Predicated region
    $region10: #{fwd.1} parent=1 // pred_check
      _
    $region11: #{fwd.1} parent=1 // pred_check_branch
      %36 = sbr.rel (0) target = $region13
    $region12: #{fwd.1} parent=1 // pred_region
      %s38 = ssub.s32 2560, 2560
      %39 = vsyncadd [#allocation6], %s38
      %s40 = sshll.u32 [#allocation7], 4
      %s41 = int_to_ptr.vmem [resolvable:$true] %s40
      %46 = dma.hbm_to_vmem [thread:$0]  %s2, 2560, %s41, [#allocation6], 256, 256, 16
    $region13: #{fwd.1} parent=1 // pred_fallthru
      _
    // Predicated region
    $region14: #{fwd.1} parent=1 // pred_check
      _
    $region15: #{fwd.1} parent=1 // pred_check_branch
      %48 = sbr.rel (0) target = $region17
    $region16: #{fwd.1} parent=1 // pred_region
      %s50 = ssub.s32 2048, 2048
      %51 = vsyncadd [#allocation9], %s50
      %s52 = sshll.u32 [#allocation8], 4
      %s53 = int_to_ptr.vmem [resolvable:$true] %s52
      %58 = dma.hbm_to_vmem [thread:$0]  %s3, 2048, %s53, [#allocation9], 128, 128, 8
    $region17: #{fwd.1} parent=1 // pred_fallthru
      _
    // Predicated region
    $region18: #{fwd.1} parent=1 // pred_check
      _
    $region19: #{fwd.1} parent=1 // pred_check_branch
      %60 = sbr.rel (0) target = $region21
    $region20: #{fwd.1} parent=1 // pred_region
      %61 = dma.done [#allocation3], 128
    $region21: #{fwd.1} parent=1 // pred_fallthru
      _
    // Predicated region
    $region22: #{fwd.1} parent=1 // pred_check
      _
    $region23: #{fwd.1} parent=1 // pred_check_branch
      %63 = sbr.rel (0) target = $region25
    $region24: #{fwd.1} parent=1 // pred_region
      %64 = dma.done [#allocation6], 1024
    $region25: #{fwd.1} parent=1 // pred_fallthru
      _
    // Predicated region
    $region26: #{fwd.1} parent=1 // pred_check
      _
    $region27: #{fwd.1} parent=1 // pred_check_branch
      %66 = sbr.rel (0) target = $region29
    $region28: #{fwd.1} parent=1 // pred_region
      %67 = dma.done [#allocation6], 2560
    $region29: #{fwd.1} parent=1 // pred_fallthru
      _
    // Predicated region
    $region30: #{fwd.1} parent=1 // pred_check
      _
    $region31: #{fwd.1} parent=1 // pred_check_branch
      %69 = sbr.rel (0) target = $region33
    $region32: #{fwd.1} parent=1 // pred_region
      %70 = dma.done [#allocation9], 2048
    $region33: #{fwd.1} parent=1 // pred_fallthru
      _
    %v71 = vld [vmem:[#allocation2] sm:$0xff]
    %v72 = vld [vmem:[#allocation5] sm:$0xff]
    %v73 = vld [vmem:[#allocation5 + $0x8] sm:$0xff]
    %v74 = vld [vmem:[#allocation5 + $0x10] sm:$0xff]
    %v75 = vld [vmem:[#allocation5 + $0x18] sm:$0xff]
    %v76 = vld [vmem:[#allocation5 + $0x20] sm:$0xff]
    %v77 = vld [vmem:[#allocation5 + $0x28] sm:$0xff]
    %v78 = vld [vmem:[#allocation5 + $0x30] sm:$0xff]
    %v79 = vld [vmem:[#allocation5 + $0x38] sm:$0xff]
    %s80 = scalar_lea.vmem [#allocation7], 128
    %v81 = vld [vmem:[%s80] ss:$8 sm:$0x3]
    %v83 = vlaneseq
    %v84 = vshrl.u32 %v83, 7
    %v85 = vsub.s32 0, %v84
    %v86 = vrot.slane %v81, %v85
    %v87 = vlaneseq
    %v88 = vshrl.u32 %v87, 7
    %v89 = vsub.s32 1, %v88
    %v90 = vrot.slane %v81, %v89
    %vm93 = vcmask 261120
    %v95 = vsel %vm93, %v71, 0
    %97 = vmatprep.subr.mxu0 %v73
    %98 = vmatpush1.msra.mxu0 %v72
    %99 = vmatprep.subr.mxu0 %v75
    %100 = vmatpush1.msra.mxu0 %v74
    %101 = vmatprep.subr.mxu0 %v77
    %102 = vmatpush1.msra.mxu0 %v76
    %103 = vmatprep.subr.mxu0 %v79
    %104 = vmatpush1.msra.mxu0 %v78
    %105 = vmatprep.subr.mxu0 0.0
    %106 = vmatpush1.msra.mxu0 0.0
    %107 = vmatprep.subr.mxu0 0.0
    %108 = vmatpush1.msra.mxu0 0.0
    %109 = vmatprep.subr.mxu0 0.0
    %110 = vmatpush1.msra.mxu0 0.0
    %111 = vmatprep.subr.mxu0 0.0
    %112 = vmatpush1.msra.mxu0 0.0
    %113 = vmatprep.subr.mxu0 0.0
    %114 = vmatpush1.msra.mxu0 0.0
    %115 = vmatprep.subr.mxu0 0.0
    %116 = vmatpush1.msra.mxu0 0.0
    %117 = vmatprep.subr.mxu0 0.0
    %118 = vmatpush1.msra.mxu0 0.0
    %119 = vmatprep.subr.mxu0 0.0
    %120 = vmatpush1.msra.mxu0 0.0
    %121 = vmatprep.subr.mxu0 0.0
    %122 = vmatpush1.msra.mxu0 0.0
    %123 = vmatprep.subr.mxu0 0.0
    %124 = vmatpush1.msra.mxu0 0.0
    %125 = vmatprep.subr.mxu0 0.0
    %126 = vmatpush1.msra.mxu0 0.0
    %127 = vmatprep.subr.mxu0 0.0
    %128 = vmatpush1.msra.mxu0 0.0
    %129 = vmatprep.subr.mxu0 0.0
    %130 = vmatpush1.msra.mxu0 0.0
    %131 = vmatprep.subr.mxu0 0.0
    %132 = vmatpush1.msra.mxu0 0.0
    %133 = vmatprep.subr.mxu0 0.0
    %134 = vmatpush1.msra.mxu0 0.0
    %135 = vmatprep.subr.mxu0 0.0
    %136 = vmatpush1.msra.mxu0 0.0
    %137 = vmatprep.subr.mxu0 0.0
    %138 = vmatpush1.msra.mxu0 0.0
    %139 = vmatprep.subr.mxu0 0.0
    %140 = vmatpush1.msra.mxu0 0.0
    %141 = vmatprep.subr.mxu0 0.0
    %142 = vmatpush1.msra.mxu0 0.0
    %143 = vmatprep.subr.mxu0 0.0
    %144 = vmatpush1.msra.mxu0 0.0
    %145 = vmatprep.subr.mxu0 0.0
    %146 = vmatpush1.msra.mxu0 0.0
    %147 = vmatprep.subr.mxu0 0.0
    %148 = vmatpush1.msra.mxu0 0.0
    %149 = vmatprep.subr.mxu0 0.0
    %150 = vmatpush1.msra.mxu0 0.0
    %151 = vmatprep.subr.mxu0 0.0
    %152 = vmatpush1.msra.mxu0 0.0
    %153 = vmatprep.subr.mxu0 0.0
    %154 = vmatpush1.msra.mxu0 0.0
    %155 = vmatprep.subr.mxu0 0.0
    %156 = vmatpush1.msra.mxu0 0.0
    %157 = vmatprep.subr.mxu0 0.0
    %158 = vmatpush1.msra.mxu0 0.0
    %159 = vmatprep.subr.mxu0 0.0
    %160 = vmatpush1.msra.mxu0 0.0
    %161 = vmatprep.mubr.f32.mxu0 0.0
    %162 = vmatmul.mubr.f32.gmra.mrb[0].mxu0 %v95
    %v163 = vpop.f32.mrb[0].mxu0
    %v164 = vadd.f32 %v86, %v163
    %v165 = vpop.f32.mrb[0].mxu0
    %v166 = vadd.f32 %v90, %v165
    %167 = vdwg.mxu0
    %169 = vrot.lane.b32.xlu0 %v164, 64
    %v170 = vpop.permute.xlu0 %169
    %vm171 = vcmask 523264
    %v172 = vsel %vm171, %v170, 0
    %v175 = vsel %vm171, %v166, 0
    %177 = vmatprep.subr.mxu0 0.0
    %178 = vmatpush1.xpose.msra.mxu0 %v175
    %179 = vmatprep.subr.mxu0 0.0
    %180 = vmatpush1.xpose.msra.mxu0 0.0
    %181 = vmatprep.subr.mxu0 0.0
    %182 = vmatpush1.xpose.msra.mxu0 0.0
    %183 = vmatprep.subr.mxu0 0.0
    %184 = vmatpush1.xpose.msra.mxu0 0.0
    %185 = vmatprep.subr.mxu0 0.0
    %186 = vmatpush1.xpose.msra.mxu0 0.0
    %187 = vmatprep.subr.mxu0 0.0
    %188 = vmatpush1.xpose.msra.mxu0 0.0
    %189 = vmatprep.subr.mxu0 0.0
    %190 = vmatpush1.xpose.msra.mxu0 0.0
    %191 = vmatprep.subr.mxu0 0.0
    %192 = vmatpush1.xpose.msra.mxu0 0.0
    %193 = vmatprep.subr.mxu0 0.0
    %194 = vmatpush1.xpose.msra.mxu0 0.0
    %195 = vmatprep.subr.mxu0 0.0
    %196 = vmatpush1.xpose.msra.mxu0 0.0
    %197 = vmatprep.subr.mxu0 0.0
    %198 = vmatpush1.xpose.msra.mxu0 0.0
    %199 = vmatprep.subr.mxu0 0.0
    %200 = vmatpush1.xpose.msra.mxu0 0.0
    %201 = vmatprep.subr.mxu0 0.0
    %202 = vmatpush1.xpose.msra.mxu0 0.0
    %203 = vmatprep.subr.mxu0 0.0
    %204 = vmatpush1.xpose.msra.mxu0 0.0
    %205 = vmatprep.subr.mxu0 0.0
    %206 = vmatpush1.xpose.msra.mxu0 0.0
    %207 = vmatprep.subr.mxu0 0.0
    %208 = vmatpush1.xpose.msra.mxu0 0.0
    %209 = vmatprep.subr.mxu0 0.0
    %210 = vmatpush1.xpose.msra.mxu0 0.0
    %211 = vmatprep.subr.mxu0 0.0
    %212 = vmatpush1.xpose.msra.mxu0 0.0
    %213 = vmatprep.subr.mxu0 0.0
    %214 = vmatpush1.xpose.msra.mxu0 0.0
    %215 = vmatprep.subr.mxu0 0.0
    %216 = vmatpush1.xpose.msra.mxu0 0.0
    %217 = vmatprep.subr.mxu0 0.0
    %218 = vmatpush1.xpose.msra.mxu0 0.0
    %219 = vmatprep.subr.mxu0 0.0
    %220 = vmatpush1.xpose.msra.mxu0 0.0
    %221 = vmatprep.subr.mxu0 0.0
    %222 = vmatpush1.xpose.msra.mxu0 0.0
    %223 = vmatprep.subr.mxu0 0.0
    %224 = vmatpush1.xpose.msra.mxu0 0.0
    %225 = vmatprep.subr.mxu0 0.0
    %226 = vmatpush1.xpose.msra.mxu0 0.0
    %227 = vmatprep.subr.mxu0 0.0
    %228 = vmatpush1.xpose.msra.mxu0 0.0
    %229 = vmatprep.subr.mxu0 0.0
    %230 = vmatpush1.xpose.msra.mxu0 0.0
    %231 = vmatprep.subr.mxu0 0.0
    %232 = vmatpush1.xpose.msra.mxu0 0.0
    %233 = vmatprep.subr.mxu0 0.0
    %234 = vmatpush1.xpose.msra.mxu0 0.0
    %235 = vmatprep.subr.mxu0 0.0
    %236 = vmatpush1.xpose.msra.mxu0 0.0
    %237 = vmatprep.subr.mxu0 0.0
    %238 = vmatpush1.xpose.msra.mxu0 0.0
    %239 = vmatprep.subr.mxu0 0.0
    %240 = vmatpush1.xpose.msra.mxu0 0.0
    %241 = vmatprep.mubr.f32.mxu0 0.0
    %242 = vmatmul.mubr.f32.gmra.mrb[0].mxu0 %v172
    %v243 = vpop.f32.mrb[0].mxu0
    %v244 = vadd.f32 0.0, %v243
    %v245 = vpop.f32.mrb[0].mxu0
    %246 = vdwg.mxu0
    %vm247 = vcmask 64512
    %v248 = vsel %vm247, %v244, -inf
    %249 = vmax.xlane.f32.xlu0 %v248
    %v250 = vpop.xlane.xlu0 %249
    %v251 = vsub.f32 %v244, %v250
    %v252 = vmul.f32 %v251, 1.442695
    %v253 = vpow.pop %v252
    %v254 = vsel %vm247, %v253, 0.0
    %255 = vadd.xlane.f32.xlu0 %v254
    %v256 = vpop.xlane.xlu0 %255
    %v257 = vrcp.pop %v256
    %v258 = vmul.f32 %v253, %v257
    %259 = vrot.lane.b32.xlu0 %v166, 64
    %v260 = vpop.permute.xlu0 %259
    %v263 = vsel %vm247, %v258, 0
    %265 = vmatprep.subr.mxu0 0.0
    %266 = vmatpush1.msra.mxu0 %v260
    %267 = vmatprep.subr.mxu0 0.0
    %268 = vmatpush1.msra.mxu0 0.0
    %269 = vmatprep.subr.mxu0 0.0
    %270 = vmatpush1.msra.mxu0 0.0
    %271 = vmatprep.subr.mxu0 0.0
    %272 = vmatpush1.msra.mxu0 0.0
    %273 = vmatprep.subr.mxu0 0.0
    %274 = vmatpush1.msra.mxu0 0.0
    %275 = vmatprep.subr.mxu0 0.0
    %276 = vmatpush1.msra.mxu0 0.0
    %277 = vmatprep.subr.mxu0 0.0
    %278 = vmatpush1.msra.mxu0 0.0
    %279 = vmatprep.subr.mxu0 0.0
    %280 = vmatpush1.msra.mxu0 0.0
    %281 = vmatprep.subr.mxu0 0.0
    %282 = vmatpush1.msra.mxu0 0.0
    %283 = vmatprep.subr.mxu0 0.0
    %284 = vmatpush1.msra.mxu0 0.0
    %285 = vmatprep.subr.mxu0 0.0
    %286 = vmatpush1.msra.mxu0 0.0
    %287 = vmatprep.subr.mxu0 0.0
    %288 = vmatpush1.msra.mxu0 0.0
    %289 = vmatprep.subr.mxu0 0.0
    %290 = vmatpush1.msra.mxu0 0.0
    %291 = vmatprep.subr.mxu0 0.0
    %292 = vmatpush1.msra.mxu0 0.0
    %293 = vmatprep.subr.mxu0 0.0
    %294 = vmatpush1.msra.mxu0 0.0
    %295 = vmatprep.subr.mxu0 0.0
    %296 = vmatpush1.msra.mxu0 0.0
    %297 = vmatprep.subr.mxu0 0.0
    %298 = vmatpush1.msra.mxu0 0.0
    %299 = vmatprep.subr.mxu0 0.0
    %300 = vmatpush1.msra.mxu0 0.0
    %301 = vmatprep.subr.mxu0 0.0
    %302 = vmatpush1.msra.mxu0 0.0
    %303 = vmatprep.subr.mxu0 0.0
    %304 = vmatpush1.msra.mxu0 0.0
    %305 = vmatprep.subr.mxu0 0.0
    %306 = vmatpush1.msra.mxu0 0.0
    %307 = vmatprep.subr.mxu0 0.0
    %308 = vmatpush1.msra.mxu0 0.0
    %309 = vmatprep.subr.mxu0 0.0
    %310 = vmatpush1.msra.mxu0 0.0
    %311 = vmatprep.subr.mxu0 0.0
    %312 = vmatpush1.msra.mxu0 0.0
    %313 = vmatprep.subr.mxu0 0.0
    %314 = vmatpush1.msra.mxu0 0.0
    %315 = vmatprep.subr.mxu0 0.0
    %316 = vmatpush1.msra.mxu0 0.0
    %317 = vmatprep.subr.mxu0 0.0
    %318 = vmatpush1.msra.mxu0 0.0
    %319 = vmatprep.subr.mxu0 0.0
    %320 = vmatpush1.msra.mxu0 0.0
    %321 = vmatprep.subr.mxu0 0.0
    %322 = vmatpush1.msra.mxu0 0.0
    %323 = vmatprep.subr.mxu0 0.0
    %324 = vmatpush1.msra.mxu0 0.0
    %325 = vmatprep.subr.mxu0 0.0
    %326 = vmatpush1.msra.mxu0 0.0
    %327 = vmatprep.subr.mxu0 0.0
    %328 = vmatpush1.msra.mxu0 0.0
    %329 = vmatprep.mubr.f32.mxu0 0.0
    %330 = vmatmul.mubr.f32.gmra.mrb[0].mxu0 %v263
    %v331 = vpop.f32.mrb[0].mxu0
    %v332 = vadd.f32 0.0, %v331
    %v333 = vpop.f32.mrb[0].mxu0
    %334 = vdwg.mxu0
    %v335 = vadd.f32 %v164, %v332
    %v336 = vld [vmem:[#allocation7 + $0x82] ss:$0 sm:$0xff]
    %v337 = vld [vmem:[#allocation7 + $0x83] ss:$0 sm:$0xff]
    %v338 = vsel %vm171, %v335, 0.0
    %339 = vadd.xlane.f32.xlu0 %v338
    %v340 = vpop.xlane.xlu0 %339
    %v341 = vmul.f32 %v335, %v335
    %v342 = vsel %vm171, %v341, 0.0
    %343 = vadd.xlane.f32.xlu0 %v342
    %v344 = vpop.xlane.xlu0 %343
    %v345 = vmul.f32 %v340, 0.015625
    %v346 = vmul.f32 %v344, 0.015625
    %v347 = vmul.f32 %v345, %v345
    %v348 = vsub.f32 %v346, %v347
    %v349 = vmax.f32 %v348, 0.0
    %v350 = vsub.f32 %v335, %v345
    %v351 = vadd.f32 %v349, 1e-05
    %v352 = vrsqrt.pop %v351
    %v353 = vmul.f32 %v350, %v352
    %v354 = vmul.f32 %v353, %v336
    %v355 = vadd.f32 %v354, %v337
    %v356 = vld [vmem:[#allocation7 + $0x81] ss:$0 sm:$0xff]
    %v357 = vadd.f32 %v355, %v356
    %v358 = vld [vmem:[#allocation7 + $0x84] ss:$0 sm:$0xff]
    %v359 = vld [vmem:[#allocation7 + $0x85] ss:$0 sm:$0xff]
    %v360 = vsel %vm171, %v357, 0.0
    %361 = vadd.xlane.f32.xlu0 %v360
    %v362 = vpop.xlane.xlu0 %361
    %v363 = vmul.f32 %v357, %v357
    %v364 = vsel %vm171, %v363, 0.0
    %365 = vadd.xlane.f32.xlu0 %v364
    %v366 = vpop.xlane.xlu0 %365
    %v367 = vmul.f32 %v362, 0.015625
    %v368 = vmul.f32 %v366, 0.015625
    %v369 = vmul.f32 %v367, %v367
    %v370 = vsub.f32 %v368, %v369
    %v371 = vmax.f32 %v370, 0.0
    %v372 = vsub.f32 %v357, %v367
    %v373 = vadd.f32 %v371, 1e-05
    %v374 = vrsqrt.pop %v373
    %v375 = vmul.f32 %v372, %v374
    %v376 = vmul.f32 %v375, %v358
    %v377 = vadd.f32 %v376, %v359
    %v378 = vld [vmem:[#allocation7] sm:$0xff]
    %v379 = vld [vmem:[#allocation7 + $0x10] sm:$0xff]
    %v380 = vld [vmem:[#allocation7 + $0x20] sm:$0xff]
    %v381 = vld [vmem:[#allocation7 + $0x30] sm:$0xff]
    %v382 = vld [vmem:[#allocation7 + $0x40] sm:$0xff]
    %v383 = vld [vmem:[#allocation7 + $0x50] sm:$0xff]
    %v384 = vld [vmem:[#allocation7 + $0x60] sm:$0xff]
    %v385 = vld [vmem:[#allocation7 + $0x70] sm:$0xff]
    %v386 = vld [vmem:[#allocation7 + $0x86] ss:$0 sm:$0xff]
    %v388 = vsel %vm171, %v377, 0
    %390 = vmatprep.subr.mxu0 0.0
    %391 = vmatpush1.msra.mxu0 %v378
    %392 = vmatprep.subr.mxu0 0.0
    %393 = vmatpush1.msra.mxu0 %v379
    %394 = vmatprep.subr.mxu0 0.0
    %395 = vmatpush1.msra.mxu0 %v380
    %396 = vmatprep.subr.mxu0 0.0
    %397 = vmatpush1.msra.mxu0 %v381
    %398 = vmatprep.subr.mxu0 0.0
    %399 = vmatpush1.msra.mxu0 %v382
    %400 = vmatprep.subr.mxu0 0.0
    %401 = vmatpush1.msra.mxu0 %v383
    %402 = vmatprep.subr.mxu0 0.0
    %403 = vmatpush1.msra.mxu0 %v384
    %404 = vmatprep.subr.mxu0 0.0
    %405 = vmatpush1.msra.mxu0 %v385
    %406 = vmatprep.subr.mxu0 0.0
    %407 = vmatpush1.msra.mxu0 0.0
    %408 = vmatprep.subr.mxu0 0.0
    %409 = vmatpush1.msra.mxu0 0.0
    %410 = vmatprep.subr.mxu0 0.0
    %411 = vmatpush1.msra.mxu0 0.0
    %412 = vmatprep.subr.mxu0 0.0
    %413 = vmatpush1.msra.mxu0 0.0
    %414 = vmatprep.subr.mxu0 0.0
    %415 = vmatpush1.msra.mxu0 0.0
    %416 = vmatprep.subr.mxu0 0.0
    %417 = vmatpush1.msra.mxu0 0.0
    %418 = vmatprep.subr.mxu0 0.0
    %419 = vmatpush1.msra.mxu0 0.0
    %420 = vmatprep.subr.mxu0 0.0
    %421 = vmatpush1.msra.mxu0 0.0
    %422 = vmatprep.subr.mxu0 0.0
    %423 = vmatpush1.msra.mxu0 0.0
    %424 = vmatprep.subr.mxu0 0.0
    %425 = vmatpush1.msra.mxu0 0.0
    %426 = vmatprep.subr.mxu0 0.0
    %427 = vmatpush1.msra.mxu0 0.0
    %428 = vmatprep.subr.mxu0 0.0
    %429 = vmatpush1.msra.mxu0 0.0
    %430 = vmatprep.subr.mxu0 0.0
    %431 = vmatpush1.msra.mxu0 0.0
    %432 = vmatprep.subr.mxu0 0.0
    %433 = vmatpush1.msra.mxu0 0.0
    %434 = vmatprep.subr.mxu0 0.0
    %435 = vmatpush1.msra.mxu0 0.0
    %436 = vmatprep.subr.mxu0 0.0
    %437 = vmatpush1.msra.mxu0 0.0
    %438 = vmatprep.subr.mxu0 0.0
    %439 = vmatpush1.msra.mxu0 0.0
    %440 = vmatprep.subr.mxu0 0.0
    %441 = vmatpush1.msra.mxu0 0.0
    %442 = vmatprep.subr.mxu0 0.0
    %443 = vmatpush1.msra.mxu0 0.0
    %444 = vmatprep.subr.mxu0 0.0
    %445 = vmatpush1.msra.mxu0 0.0
    %446 = vmatprep.subr.mxu0 0.0
    %447 = vmatpush1.msra.mxu0 0.0
    %448 = vmatprep.subr.mxu0 0.0
    %449 = vmatpush1.msra.mxu0 0.0
    %450 = vmatprep.subr.mxu0 0.0
    %451 = vmatpush1.msra.mxu0 0.0
    %452 = vmatprep.subr.mxu0 0.0
    %453 = vmatpush1.msra.mxu0 0.0
    %454 = vmatprep.mubr.f32.mxu0 0.0
    %455 = vmatmul.mubr.f32.gmra.mrb[0].mxu0 %v388
    %v456 = vpop.f32.mrb[0].mxu0
    %v457 = vadd.f32 %v386, %v456
    %v458 = vpop.f32.mrb[0].mxu0
    %459 = vdwg.mxu0
    %v460 = vmax.f32 %v457, 0.0
    %v461 = vld [vmem:[#allocation8] sm:$0xff]
    %v462 = vld [vmem:[#allocation8 + $0x8] sm:$0xff]
    %v463 = vld [vmem:[#allocation8 + $0x10] sm:$0xff]
    %v464 = vld [vmem:[#allocation8 + $0x18] sm:$0xff]
    %v465 = vld [vmem:[#allocation8 + $0x20] sm:$0xff]
    %v466 = vld [vmem:[#allocation8 + $0x28] sm:$0xff]
    %v467 = vld [vmem:[#allocation8 + $0x30] sm:$0xff]
    %v468 = vld [vmem:[#allocation8 + $0x38] sm:$0xff]
    %v469 = vld [vmem:[#allocation8 + $0x40] sm:$0xff]
    %v470 = vld [vmem:[#allocation8 + $0x48] sm:$0xff]
    %v471 = vld [vmem:[#allocation8 + $0x50] sm:$0xff]
    %v472 = vld [vmem:[#allocation8 + $0x58] sm:$0xff]
    %v473 = vld [vmem:[#allocation8 + $0x60] sm:$0xff]
    %v474 = vld [vmem:[#allocation8 + $0x68] sm:$0xff]
    %v475 = vld [vmem:[#allocation8 + $0x70] sm:$0xff]
    %v476 = vld [vmem:[#allocation8 + $0x78] sm:$0xff]
    %v477 = vld [vmem:[#allocation7 + $0x87] ss:$0 sm:$0xff]
    %478 = vmatprep.subr.mxu0 0.0
    %479 = vmatpush1.msra.mxu0 %v461
    %480 = vmatprep.subr.mxu0 0.0
    %481 = vmatpush1.msra.mxu0 %v462
    %482 = vmatprep.subr.mxu0 0.0
    %483 = vmatpush1.msra.mxu0 %v463
    %484 = vmatprep.subr.mxu0 0.0
    %485 = vmatpush1.msra.mxu0 %v464
    %486 = vmatprep.subr.mxu0 0.0
    %487 = vmatpush1.msra.mxu0 %v465
    %488 = vmatprep.subr.mxu0 0.0
    %489 = vmatpush1.msra.mxu0 %v466
    %490 = vmatprep.subr.mxu0 0.0
    %491 = vmatpush1.msra.mxu0 %v467
    %492 = vmatprep.subr.mxu0 0.0
    %493 = vmatpush1.msra.mxu0 %v468
    %494 = vmatprep.subr.mxu0 0.0
    %495 = vmatpush1.msra.mxu0 %v469
    %496 = vmatprep.subr.mxu0 0.0
    %497 = vmatpush1.msra.mxu0 %v470
    %498 = vmatprep.subr.mxu0 0.0
    %499 = vmatpush1.msra.mxu0 %v471
    %500 = vmatprep.subr.mxu0 0.0
    %501 = vmatpush1.msra.mxu0 %v472
    %502 = vmatprep.subr.mxu0 0.0
    %503 = vmatpush1.msra.mxu0 %v473
    %504 = vmatprep.subr.mxu0 0.0
    %505 = vmatpush1.msra.mxu0 %v474
    %506 = vmatprep.subr.mxu0 0.0
    %507 = vmatpush1.msra.mxu0 %v475
    %508 = vmatprep.subr.mxu0 0.0
    %509 = vmatpush1.msra.mxu0 %v476
    %510 = vmatprep.subr.mxu0 0.0
    %511 = vmatpush1.msra.mxu0 0.0
    %512 = vmatprep.subr.mxu0 0.0
    %513 = vmatpush1.msra.mxu0 0.0
    %514 = vmatprep.subr.mxu0 0.0
    %515 = vmatpush1.msra.mxu0 0.0
    %516 = vmatprep.subr.mxu0 0.0
    %517 = vmatpush1.msra.mxu0 0.0
    %518 = vmatprep.subr.mxu0 0.0
    %519 = vmatpush1.msra.mxu0 0.0
    %520 = vmatprep.subr.mxu0 0.0
    %521 = vmatpush1.msra.mxu0 0.0
    %522 = vmatprep.subr.mxu0 0.0
    %523 = vmatpush1.msra.mxu0 0.0
    %524 = vmatprep.subr.mxu0 0.0
    %525 = vmatpush1.msra.mxu0 0.0
    %526 = vmatprep.subr.mxu0 0.0
    %527 = vmatpush1.msra.mxu0 0.0
    %528 = vmatprep.subr.mxu0 0.0
    %529 = vmatpush1.msra.mxu0 0.0
    %530 = vmatprep.subr.mxu0 0.0
    %531 = vmatpush1.msra.mxu0 0.0
    %532 = vmatprep.subr.mxu0 0.0
    %533 = vmatpush1.msra.mxu0 0.0
    %534 = vmatprep.subr.mxu0 0.0
    %535 = vmatpush1.msra.mxu0 0.0
    %536 = vmatprep.subr.mxu0 0.0
    %537 = vmatpush1.msra.mxu0 0.0
    %538 = vmatprep.subr.mxu0 0.0
    %539 = vmatpush1.msra.mxu0 0.0
    %540 = vmatprep.subr.mxu0 0.0
    %541 = vmatpush1.msra.mxu0 0.0
    %542 = vmatprep.mubr.f32.mxu0 0.0
    %543 = vmatmul.mubr.f32.gmra.mrb[0].mxu0 %v460
    %v544 = vpop.f32.mrb[0].mxu0
    %v545 = vadd.f32 %v477, %v544
    %v546 = vpop.f32.mrb[0].mxu0
    %547 = vdwg.mxu0
    %v548 = vadd.f32 %v377, %v545
    %v549 = vsel %vm171, %v548, 0.0
    %550 = vadd.xlane.f32.xlu0 %v549
    %v551 = vpop.xlane.xlu0 %550
    %v552 = vmul.f32 %v548, %v548
    %v553 = vsel %vm171, %v552, 0.0
    %554 = vadd.xlane.f32.xlu0 %v553
    %v555 = vpop.xlane.xlu0 %554
    %v556 = vmul.f32 %v551, 0.015625
    %v557 = vmul.f32 %v555, 0.015625
    %v558 = vmul.f32 %v556, %v556
    %v559 = vsub.f32 %v557, %v558
    %v560 = vmax.f32 %v559, 0.0
    %v561 = vsub.f32 %v548, %v556
    %v562 = vadd.f32 %v560, 1e-05
    %v563 = vrsqrt.pop %v562
    %v564 = vmul.f32 %v561, %v563
    %v565 = vld [vmem:[#allocation7 + $0x8] sm:$0xff]
    %v566 = vld [vmem:[#allocation7 + $0x18] sm:$0xff]
    %v567 = vld [vmem:[#allocation7 + $0x28] sm:$0xff]
    %v568 = vld [vmem:[#allocation7 + $0x38] sm:$0xff]
    %v569 = vld [vmem:[#allocation7 + $0x48] sm:$0xff]
    %v570 = vld [vmem:[#allocation7 + $0x58] sm:$0xff]
    %v571 = vld [vmem:[#allocation7 + $0x68] sm:$0xff]
    %v572 = vld [vmem:[#allocation7 + $0x78] sm:$0xff]
    %v573 = vld [vmem:[#allocation7 + $0x90] ss:$0 sm:$0xff]
    %v575 = vsel %vm171, %v564, 0
    %577 = vmatprep.subr.mxu0 0.0
    %578 = vmatpush1.msra.mxu0 %v565
    %579 = vmatprep.subr.mxu0 0.0
    %580 = vmatpush1.msra.mxu0 %v566
    %581 = vmatprep.subr.mxu0 0.0
    %582 = vmatpush1.msra.mxu0 %v567
    %583 = vmatprep.subr.mxu0 0.0
    %584 = vmatpush1.msra.mxu0 %v568
    %585 = vmatprep.subr.mxu0 0.0
    %586 = vmatpush1.msra.mxu0 %v569
    %587 = vmatprep.subr.mxu0 0.0
    %588 = vmatpush1.msra.mxu0 %v570
    %589 = vmatprep.subr.mxu0 0.0
    %590 = vmatpush1.msra.mxu0 %v571
    %591 = vmatprep.subr.mxu0 0.0
    %592 = vmatpush1.msra.mxu0 %v572
    %593 = vmatprep.subr.mxu0 0.0
    %594 = vmatpush1.msra.mxu0 0.0
    %595 = vmatprep.subr.mxu0 0.0
    %596 = vmatpush1.msra.mxu0 0.0
    %597 = vmatprep.subr.mxu0 0.0
    %598 = vmatpush1.msra.mxu0 0.0
    %599 = vmatprep.subr.mxu0 0.0
    %600 = vmatpush1.msra.mxu0 0.0
    %601 = vmatprep.subr.mxu0 0.0
    %602 = vmatpush1.msra.mxu0 0.0
    %603 = vmatprep.subr.mxu0 0.0
    %604 = vmatpush1.msra.mxu0 0.0
    %605 = vmatprep.subr.mxu0 0.0
    %606 = vmatpush1.msra.mxu0 0.0
    %607 = vmatprep.subr.mxu0 0.0
    %608 = vmatpush1.msra.mxu0 0.0
    %609 = vmatprep.subr.mxu0 0.0
    %610 = vmatpush1.msra.mxu0 0.0
    %611 = vmatprep.subr.mxu0 0.0
    %612 = vmatpush1.msra.mxu0 0.0
    %613 = vmatprep.subr.mxu0 0.0
    %614 = vmatpush1.msra.mxu0 0.0
    %615 = vmatprep.subr.mxu0 0.0
    %616 = vmatpush1.msra.mxu0 0.0
    %617 = vmatprep.subr.mxu0 0.0
    %618 = vmatpush1.msra.mxu0 0.0
    %619 = vmatprep.subr.mxu0 0.0
    %620 = vmatpush1.msra.mxu0 0.0
    %621 = vmatprep.subr.mxu0 0.0
    %622 = vmatpush1.msra.mxu0 0.0
    %623 = vmatprep.subr.mxu0 0.0
    %624 = vmatpush1.msra.mxu0 0.0
    %625 = vmatprep.subr.mxu0 0.0
    %626 = vmatpush1.msra.mxu0 0.0
    %627 = vmatprep.subr.mxu0 0.0
    %628 = vmatpush1.msra.mxu0 0.0
    %629 = vmatprep.subr.mxu0 0.0
    %630 = vmatpush1.msra.mxu0 0.0
    %631 = vmatprep.subr.mxu0 0.0
    %632 = vmatpush1.msra.mxu0 0.0
    %633 = vmatprep.subr.mxu0 0.0
    %634 = vmatpush1.msra.mxu0 0.0
    %635 = vmatprep.subr.mxu0 0.0
    %636 = vmatpush1.msra.mxu0 0.0
    %637 = vmatprep.subr.mxu0 0.0
    %638 = vmatpush1.msra.mxu0 0.0
    %639 = vmatprep.subr.mxu0 0.0
    %640 = vmatpush1.msra.mxu0 0.0
    %641 = vmatprep.mubr.f32.mxu0 0.0
    %642 = vmatmul.mubr.f32.gmra.mrb[0].mxu0 %v575
    %v643 = vpop.f32.mrb[0].mxu0
    %v644 = vadd.f32 %v573, %v643
    %v645 = vpop.f32.mrb[0].mxu0
    %646 = vdwg.mxu0
    %647 = vst [vmem:[#allocation10] sm:$0xff] %v644
    // Predicated region
    $region34: #{fwd.1} parent=1 // pred_check
      _
    $region35: #{fwd.1} parent=1 // pred_check_branch
      %649 = sbr.rel (0) target = $region37
    $region36: #{fwd.1} parent=1 // pred_region
      %s651 = ssub.s32 128, 128
      %652 = vsyncadd [#allocation4], %s651
      %s654 = sshll.u32 [#allocation10], 4
      %s655 = int_to_ptr.vmem [resolvable:$true] %s654
      %657 = dma.vmem_to_hbm [thread:$0]  %s655, 128, %s4, [#allocation4]
    $region37: #{fwd.1} parent=1 // pred_fallthru
      _
    // Predicated region
    $region38: #{fwd.1} parent=1 // pred_check
      _
    $region39: #{fwd.1} parent=1 // pred_check_branch
      %659 = sbr.rel (0) target = $region41
    $region40: #{fwd.1} parent=1 // pred_region
      %660 = dma.done [#allocation4], 128
    $region41: #{fwd.1} parent=1 // pred_fallthru
      _
    %661 = vsyncpa [#allocation3], 1
    %662 = vsyncpa [#allocation6], 1
    %663 = vsyncpa [#allocation9], 1
    %664 = vsyncpa [#allocation4], 1

</llo_original>
